<compile_context>
chip_gen: v7x
topology: tpu7x:2x2x1
jax: 0.10.0
libtpu: 0.0.40
codegen_flags: <defaults>
</compile_context>

<pallas_src>
import functools

import jax
import jax.numpy as jnp
from jax.experimental import pallas as pl
from jax.experimental.pallas import tpu as pltpu


# --------------------------------------------------------------------------- #
# Fused kernel: pool + FC1 + ReLU + FC2 + sigmoid + scale, one read of x.
# --------------------------------------------------------------------------- #
def _se_fused_kernel(x_ref, w1_ref, w2_ref, o_ref, acc_ref, gate_ref, *xbuf,
                     inv_hw, hw, hw_t, n_hw):
    """Grid = (B, 2*n_hw).  Phase 1 (h < n_hw): accumulate per-channel sums and
    stash x tiles in VMEM.  Phase 2 (h >= n_hw): first step computes the gate,
    every step writes out = x_tile * gate.

    x_ref  : (C, hw_t)  spatial tile (clamped to the last tile during phase 2)
    w1_ref : (Cr, C)    torch Linear(C, C//r).weight
    w2_ref : (C, Cr)    torch Linear(C//r, C).weight
    o_ref  : (C, hw_t)  output tile
    acc_ref: (C, 1)     f32 running spatial sum
    gate_ref:(C, 1)     f32 per-channel sigmoid gate
    xbuf   : optional (n_hw, C, hw_t) resident stash (absent when n_hw == 1,
             where x_ref itself stays resident across both phases).
    """
    h = pl.program_id(1)

    @pl.when(h == 0)
    def _init():
        acc_ref[...] = jnp.zeros_like(acc_ref)

    @pl.when(h < n_hw)
    def _accumulate():
        xt = x_ref[...].astype(jnp.float32)
        if hw % hw_t != 0:
            # Ragged last tile: edge-block contents past the array extent are
            # undefined on read, so mask before accumulating.
            lane = jax.lax.broadcasted_iota(jnp.int32, xt.shape, 1)
            xt = jnp.where(h * hw_t + lane < hw, xt, 0.0)
        acc_ref[...] += jnp.sum(xt, axis=1, keepdims=True)
        if xbuf:
            xbuf[0][h] = x_ref[...]

    @pl.when(h >= n_hw)
    def _scale():
        h2 = h - n_hw

        @pl.when(h2 == 0)
        def _gate():
            mean = acc_ref[...] * inv_hw                                    # (C, 1)
            y1 = jnp.dot(w1_ref[...], mean, preferred_element_type=jnp.float32)
            y1 = jnp.maximum(y1, 0.0)                                       # (Cr, 1)
            y2 = jnp.dot(w2_ref[...], y1, preferred_element_type=jnp.float32)
            gate_ref[...] = 1.0 / (1.0 + jnp.exp(-y2))                      # sigmoid

        xt = xbuf[0][h2] if xbuf else x_ref[...]
        # Ragged output tiles are handled by Pallas' masked edge-block store.
        o_ref[...] = (xt.astype(jnp.float32) * gate_ref[...]).astype(o_ref.dtype)


# --------------------------------------------------------------------------- #
# Fallback kernels (per-sample slab too large to keep resident in VMEM).
# --------------------------------------------------------------------------- #
def _se_pool_gate_kernel(x_ref, w1_ref, w2_ref, gate_ref, acc_ref,
                         *, inv_hw, hw, hw_t):
    h = pl.program_id(1)

    @pl.when(h == 0)
    def _init():
        acc_ref[...] = jnp.zeros_like(acc_ref)

    xt = x_ref[...].astype(jnp.float32)
    if hw % hw_t != 0:
        lane = jax.lax.broadcasted_iota(jnp.int32, xt.shape, 1)
        xt = jnp.where(h * hw_t + lane < hw, xt, 0.0)
    acc_ref[...] += jnp.sum(xt, axis=1, keepdims=True)

    @pl.when(h == pl.num_programs(1) - 1)
    def _gate():
        mean = acc_ref[...] * inv_hw
        y1 = jnp.maximum(
            jnp.dot(w1_ref[...], mean, preferred_element_type=jnp.float32), 0.0)
        y2 = jnp.dot(w2_ref[...], y1, preferred_element_type=jnp.float32)
        gate_ref[...] = (1.0 / (1.0 + jnp.exp(-y2))).astype(gate_ref.dtype)


def _se_scale_kernel(x_ref, g_ref, o_ref):
    o_ref[...] = (x_ref[...] * g_ref[...]).astype(o_ref.dtype)


# --------------------------------------------------------------------------- #
# Wrapper
# --------------------------------------------------------------------------- #
def se_layer_pallas(x_nchw, w1, w2, *, max_hw_tile=None,
                    max_resident_bytes=8 * 1024 * 1024):
    """SELayer forward.  x_nchw: (B, C, H, W); w1: (C//r, C); w2: (C, C//r)."""
    B, C, H, W = x_nchw.shape
    Cr = w1.shape[0]
    assert w1.shape == (Cr, C) and w2.shape == (C, Cr)
    HW = H * W
    x = x_nchw.reshape(B, C, HW)           # metadata-only reshape, no HBM copy

    if max_hw_tile is None:
        # TODO(synk): raise the cap (or take full HW) on v5e/v6e (128 MiB VMEM).
        max_hw_tile = 512 if C >= 1024 else 1024
    hw_t = HW if HW <= max_hw_tile else max_hw_tile   # full extent or 128-multiple
    n_hw = pl.cdiv(HW, hw_t)

    itemsize = x.dtype.itemsize
    slab_bytes = n_hw * hw_t * C * itemsize            # per-sample resident stash
    use_fused = (n_hw == 1) or (slab_bytes <= max_resident_bytes)

    block_bytes = C * hw_t * itemsize
    weight_bytes = (Cr * C + C * Cr) * w1.dtype.itemsize
    est = (4 * block_bytes + 2 * weight_bytes + 8 * C
           + (slab_bytes if (use_fused and n_hw > 1) else 0) + (1 << 20))
    vmem_limit = int(min(64 << 20, max(32 << 20, est)))

    w_specs = [pl.BlockSpec((Cr, C), lambda b, h: (0, 0)),
               pl.BlockSpec((C, Cr), lambda b, h: (0, 0))]

    if use_fused:
        scratch = [pltpu.VMEM((C, 1), jnp.float32),     # running spatial sum
                   pltpu.VMEM((C, 1), jnp.float32)]     # sigmoid gate
        if n_hw > 1:
            scratch.append(pltpu.VMEM((n_hw, C, hw_t), x.dtype))  # resident slab

        out = pl.pallas_call(
            functools.partial(_se_fused_kernel, inv_hw=1.0 / float(HW),
                              hw=HW, hw_t=hw_t, n_hw=n_hw),
            out_shape=jax.ShapeDtypeStruct((B, C, HW), x.dtype),
            grid_spec=pltpu.PrefetchScalarGridSpec(
                num_scalar_prefetch=0,
                grid=(B, 2 * n_hw),
                in_specs=[
                    # phase 2 clamps to the last tile -> block index unchanged,
                    # so Pallas issues no extra DMA for the second phase.
                    pl.BlockSpec((None, C, hw_t),
                                 lambda b, h: (b, 0, jnp.minimum(h, n_hw - 1))),
                    *w_specs,
                ],
                out_specs=pl.BlockSpec(
                    (None, C, hw_t),
                    lambda b, h: (b, 0, jnp.maximum(h - n_hw, 0))),
                scratch_shapes=scratch),
            compiler_params=pltpu.CompilerParams(
                dimension_semantics=("parallel", "arbitrary"),
                vmem_limit_bytes=vmem_limit),
        )(x, w1, w2)
        return out.reshape(B, C, H, W)

    # ---- fallback: 2 kernels, 3 HBM passes over x (read + read + write) ----
    gate = pl.pallas_call(
        functools.partial(_se_pool_gate_kernel, inv_hw=1.0 / float(HW),
                          hw=HW, hw_t=hw_t),
        out_shape=jax.ShapeDtypeStruct((B, C, 1), x.dtype),
        grid_spec=pltpu.PrefetchScalarGridSpec(
            num_scalar_prefetch=0,
            grid=(B, n_hw),
            in_specs=[
                pl.BlockSpec((None, C, hw_t), lambda b, h: (b, 0, h)),
                *w_specs,
            ],
            out_specs=pl.BlockSpec((None, C, 1), lambda b, h: (b, 0, 0)),
            scratch_shapes=[pltpu.VMEM((C, 1), jnp.float32)]),
        compiler_params=pltpu.CompilerParams(
            dimension_semantics=("parallel", "arbitrary"),
            vmem_limit_bytes=vmem_limit),
    )(x, w1, w2)

    out = pl.pallas_call(
        _se_scale_kernel,
        out_shape=jax.ShapeDtypeStruct((B, C, HW), x.dtype),
        grid=(B, n_hw),
        in_specs=[
            pl.BlockSpec((None, C, hw_t), lambda b, h: (b, 0, h)),
            pl.BlockSpec((None, C, 1), lambda b, h: (b, 0, 0)),
        ],
        out_specs=pl.BlockSpec((None, C, hw_t), lambda b, h: (b, 0, h)),
        compiler_params=pltpu.CompilerParams(
            dimension_semantics=("parallel", "parallel"),
            vmem_limit_bytes=vmem_limit),
    )(x, gate)
    return out.reshape(B, C, H, W)


def se_layer_ref(x, w1, w2):
    """Pure-JAX reference matching the PyTorch SELayer forward."""
    y = jnp.mean(x, axis=(2, 3))                      # AdaptiveAvgPool2d(1)
    y = jnp.maximum(y @ w1.T, 0.0)                    # Linear(C, C//r) + ReLU
    y = 1.0 / (1.0 + jnp.exp(-(y @ w2.T)))            # Linear(C//r, C) + Sigmoid
    return x * y[:, :, None, None]


if __name__ == "__main__":
    key = jax.random.PRNGKey(0)
    kx, k1, k2 = jax.random.split(key, 3)

    # channel=128, reduction=16 -> hidden=8 (fused single-tile path).
    B, C, H, W = 2, 128, 16, 16
    reduction = 16
    Cr = C // reduction

    x = jax.random.normal(kx, (B, C, H, W), jnp.float32)
    w1 = jax.random.normal(k1, (Cr, C), jnp.float32) * (1.0 / float(C) ** 0.5)
    w2 = jax.random.normal(k2, (C, Cr), jnp.float32) * (1.0 / float(Cr) ** 0.5)

    out = jax.block_until_ready(se_layer_pallas(x, w1, w2))
    ref = se_layer_ref(x, w1, w2)
    assert out.shape == (B, C, H, W), out.shape
    assert bool(jnp.all(jnp.isfinite(out)))
    err = float(jnp.max(jnp.abs(out - ref)))
    assert err < 1e-3, err

    # Second shape exercises the multi-tile fused path with a ragged last tile
    # (HW=400, hw_t=128) and the 2-kernel fallback path.
    B2, C2, H2, W2 = 2, 64, 20, 20
    Cr2 = C2 // reduction
    x2 = jax.random.normal(kx, (B2, C2, H2, W2), jnp.float32)
    w1b = jax.random.normal(k1, (Cr2, C2), jnp.float32) * (1.0 / float(C2) ** 0.5)
    w2b = jax.random.normal(k2, (C2, Cr2), jnp.float32) * (1.0 / float(Cr2) ** 0.5)
    ref2 = se_layer_ref(x2, w1b, w2b)

    out2 = jax.block_until_ready(se_layer_pallas(x2, w1b, w2b, max_hw_tile=128))
    err2 = float(jnp.max(jnp.abs(out2 - ref2)))
    assert err2 < 1e-3, err2

    out3 = jax.block_until_ready(
        se_layer_pallas(x2, w1b, w2b, max_hw_tile=128, max_resident_bytes=0))
    err3 = float(jnp.max(jnp.abs(out3 - ref2)))
    assert err3 < 1e-3, err3

    print("KERNEL_OK")
</pallas_src>

<mosaic_0001>
module attributes {stable_mosaic.version = 11 : i64} {
  func.func @_se_fused_kernel(%arg0: i32, %arg1: i32, %arg2: memref<1x128x256xf32, #tpu.memory_space<vmem>>, %arg3: memref<8x128xf32, #tpu.memory_space<vmem>>, %arg4: memref<128x8xf32, #tpu.memory_space<vmem>>, %arg5: memref<1x128x256xf32, #tpu.memory_space<vmem>>, %arg6: memref<128x1xf32, #tpu.memory_space<vmem>>, %arg7: memref<128x1xf32, #tpu.memory_space<vmem>>) attributes {dimension_semantics = [#tpu.dimension_semantics<parallel>, #tpu.dimension_semantics<arbitrary>], iteration_bounds = array<i64: 2, 2>, scalar_prefetch = 0 : i64, scratch_operands = 2 : i64, tpu.core_type = #tpu.core_type<tc>, window_params = [{transform_indices = @transform_0, window_bounds = array<i64: 1, 128, 256>}, {pipeline_mode = #tpu.pipeline_mode<synchronous>, transform_indices = @transform_1, window_bounds = array<i64: 8, 128>}, {pipeline_mode = #tpu.pipeline_mode<synchronous>, transform_indices = @transform_2, window_bounds = array<i64: 128, 8>}, {transform_indices = @transform_3, window_bounds = array<i64: 1, 128, 256>}]} {
    %c0_i32 = arith.constant 0 : i32
    %0 = arith.cmpi eq, %arg1, %c0_i32 : i32
    %1 = arith.extui %0 : i1 to i32
    %c0_i32_0 = arith.constant 0 : i32
    %2 = arith.cmpi ne, %1, %c0_i32_0 : i32
    scf.if %2 {
      %cst = arith.constant 0.000000e+00 : f32
      %9 = vector.broadcast %cst : f32 to vector<128x1xf32>
      %c0 = arith.constant 0 : index
      %c0_4 = arith.constant 0 : index
      %10 = vector.load %arg6[%c0, %c0_4] : memref<128x1xf32, #tpu.memory_space<vmem>>, vector<128x1xf32>
      tpu.vector_store %arg6[%c0, %c0_4], %9 {strides = array<i32>} : memref<128x1xf32, #tpu.memory_space<vmem>>, vector<128x1xf32>,
    } else {
    }
    %c1_i32 = arith.constant 1 : i32
    %3 = arith.cmpi slt, %arg1, %c1_i32 : i32
    %4 = arith.extui %3 : i1 to i32
    %c0_i32_1 = arith.constant 0 : i32
    %5 = arith.cmpi ne, %4, %c0_i32_1 : i32
    scf.if %5 {
      %c0 = arith.constant 0 : index
      %c0_4 = arith.constant 0 : index
      %c0_5 = arith.constant 0 : index
      %9 = vector.load %arg2[%c0, %c0_4, %c0_5] : memref<1x128x256xf32, #tpu.memory_space<vmem>>, vector<1x128x256xf32>
      %10 = vector.shape_cast %9 : vector<1x128x256xf32> to vector<128x256xf32>
      %c0_6 = arith.constant 0 : index
      %c0_7 = arith.constant 0 : index
      %11 = vector.load %arg6[%c0_6, %c0_7] : memref<128x1xf32, #tpu.memory_space<vmem>>, vector<128x1xf32>
      %cst = arith.constant dense<0.000000e+00> : vector<128xf32>
      %12 = vector.multi_reduction <add>, %10, %cst [1] : vector<128x256xf32> to vector<128xf32>
      %13 = vector.shape_cast %12 : vector<128xf32> to vector<128x1xf32>
      %14 = arith.addf %11, %13 : vector<128x1xf32>
      %c0_8 = arith.constant 0 : index
      %c0_9 = arith.constant 0 : index
      %15 = vector.load %arg6[%c0_8, %c0_9] : memref<128x1xf32, #tpu.memory_space<vmem>>, vector<128x1xf32>
      tpu.vector_store %arg6[%c0_8, %c0_9], %14 {strides = array<i32>} : memref<128x1xf32, #tpu.memory_space<vmem>>, vector<128x1xf32>,
    } else {
    }
    %c1_i32_2 = arith.constant 1 : i32
    %6 = arith.cmpi sge, %arg1, %c1_i32_2 : i32
    %7 = arith.extui %6 : i1 to i32
    %c0_i32_3 = arith.constant 0 : i32
    %8 = arith.cmpi ne, %7, %c0_i32_3 : i32
    scf.if %8 {
      %c1_i32_4 = arith.constant 1 : i32
      %9 = arith.subi %arg1, %c1_i32_4 : i32
      %c0_i32_5 = arith.constant 0 : i32
      %10 = arith.cmpi eq, %9, %c0_i32_5 : i32
      %11 = arith.extui %10 : i1 to i32
      %c0_i32_6 = arith.constant 0 : i32
      %12 = arith.cmpi ne, %11, %c0_i32_6 : i32
      scf.if %12 {
        %c0_14 = arith.constant 0 : index
        %c0_15 = arith.constant 0 : index
        %21 = vector.load %arg6[%c0_14, %c0_15] : memref<128x1xf32, #tpu.memory_space<vmem>>, vector<128x1xf32>
        %cst = arith.constant 3.906250e-03 : f32
        %22 = vector.broadcast %cst : f32 to vector<128x1xf32>
        %23 = arith.mulf %21, %22 : vector<128x1xf32>
        %c0_16 = arith.constant 0 : index
        %c0_17 = arith.constant 0 : index
        %24 = vector.load %arg3[%c0_16, %c0_17] : memref<8x128xf32, #tpu.memory_space<vmem>>, vector<8x128xf32>
        %cst_18 = arith.constant dense<0.000000e+00> : vector<8x1xf32>
        %25 = tpu.matmul %24, %23, %cst_18 {dimension_numbers = #tpu.dot_dimension_numbers<[1], [0], [0], [1], [0, 0, 1, 1], [], []>} : vector<8x128xf32>, vector<128x1xf32>, vector<8x1xf32> -> vector<8x1xf32>
        %cst_19 = arith.constant 0.000000e+00 : f32
        %26 = vector.broadcast %cst_19 : f32 to vector<8x1xf32>
        %27 = arith.maximumf %25, %26 : vector<8x1xf32>
        %c0_20 = arith.constant 0 : index
        %c0_21 = arith.constant 0 : index
        %28 = vector.load %arg4[%c0_20, %c0_21] : memref<128x8xf32, #tpu.memory_space<vmem>>, vector<128x8xf32>
        %cst_22 = arith.constant dense<0.000000e+00> : vector<128x1xf32>
        %29 = tpu.matmul %28, %27, %cst_22 {dimension_numbers = #tpu.dot_dimension_numbers<[1], [0], [0], [1], [0, 0, 1, 1], [], []>} : vector<128x8xf32>, vector<8x1xf32>, vector<128x1xf32> -> vector<128x1xf32>
        %cst_23 = arith.constant 0.000000e+00 : f32
        %30 = vector.broadcast %cst_23 : f32 to vector<128x1xf32>
        %31 = arith.subf %30, %29 : vector<128x1xf32>
        %32 = math.exp %31 : vector<128x1xf32>
        %cst_24 = arith.constant 1.000000e+00 : f32
        %33 = vector.broadcast %cst_24 : f32 to vector<128x1xf32>
        %34 = arith.addf %33, %32 : vector<128x1xf32>
        %cst_25 = arith.constant 1.000000e+00 : f32
        %35 = vector.broadcast %cst_25 : f32 to vector<128x1xf32>
        %36 = arith.divf %35, %34 : vector<128x1xf32>
        %c0_26 = arith.constant 0 : index
        %c0_27 = arith.constant 0 : index
        %37 = vector.load %arg7[%c0_26, %c0_27] : memref<128x1xf32, #tpu.memory_space<vmem>>, vector<128x1xf32>
        tpu.vector_store %arg7[%c0_26, %c0_27], %36 {strides = array<i32>} : memref<128x1xf32, #tpu.memory_space<vmem>>, vector<128x1xf32>,
      } else {
      }
      %c0 = arith.constant 0 : index
      %c0_7 = arith.constant 0 : index
      %c0_8 = arith.constant 0 : index
      %13 = vector.load %arg2[%c0, %c0_7, %c0_8] : memref<1x128x256xf32, #tpu.memory_space<vmem>>, vector<1x128x256xf32>
      %14 = vector.shape_cast %13 : vector<1x128x256xf32> to vector<128x256xf32>
      %c0_9 = arith.constant 0 : index
      %c0_10 = arith.constant 0 : index
      %15 = vector.load %arg7[%c0_9, %c0_10] : memref<128x1xf32, #tpu.memory_space<vmem>>, vector<128x1xf32>
      %16 = vector.broadcast %15 : vector<128x1xf32> to vector<128x256xf32>
      %17 = arith.mulf %14, %16 : vector<128x256xf32>
      %c0_11 = arith.constant 0 : index
      %c0_12 = arith.constant 0 : index
      %c0_13 = arith.constant 0 : index
      %18 = vector.load %arg5[%c0_11, %c0_12, %c0_13] : memref<1x128x256xf32, #tpu.memory_space<vmem>>, vector<1x128x256xf32>
      %19 = vector.shape_cast %18 : vector<1x128x256xf32> to vector<128x256xf32>
      %20 = vector.shape_cast %17 : vector<128x256xf32> to vector<1x128x256xf32>
      tpu.vector_store %arg5[%c0_11, %c0_12, %c0_13], %20 {strides = array<i32>} : memref<1x128x256xf32, #tpu.memory_space<vmem>>, vector<1x128x256xf32>,
    } else {
    }
    return
  }
  func.func @transform_0(%arg0: i32, %arg1: i32) -> (i32, i32, i32) {
    %c0_i32 = arith.constant 0 : i32
    %0 = arith.minsi %arg1, %c0_i32 : i32
    %c0_i32_0 = arith.constant 0 : i32
    %c0_i32_1 = arith.constant 0 : i32
    return %arg0, %c0_i32_0, %0 : i32, i32, i32
  }
  func.func @transform_1(%arg0: i32, %arg1: i32) -> (i32, i32) {
    %c0_i32 = arith.constant 0 : i32
    %c0_i32_0 = arith.constant 0 : i32
    %c0_i32_1 = arith.constant 0 : i32
    return %c0_i32, %c0_i32_0 : i32, i32
  }
  func.func @transform_2(%arg0: i32, %arg1: i32) -> (i32, i32) {
    %c0_i32 = arith.constant 0 : i32
    %c0_i32_0 = arith.constant 0 : i32
    %c0_i32_1 = arith.constant 0 : i32
    return %c0_i32, %c0_i32_0 : i32, i32
  }
  func.func @transform_3(%arg0: i32, %arg1: i32) -> (i32, i32, i32) {
    %c1_i32 = arith.constant 1 : i32
    %0 = arith.subi %arg1, %c1_i32 : i32
    %c0_i32 = arith.constant 0 : i32
    %1 = arith.maxsi %0, %c0_i32 : i32
    %c0_i32_0 = arith.constant 0 : i32
    %c0_i32_1 = arith.constant 0 : i32
    return %arg0, %c0_i32_0, %1 : i32, i32, i32
  }
}

</mosaic_0001>

<llo_original>
// kernel: tpu_custom_call.1
$region0: #{tpu_custom_call.1}
  #allocation0 [shape = 'u32[]', space=smem, size = 0x4, offset = 0x4, fixed_abs, tag = 'smem constant byte address 0x4 - core index']
  #allocation1 [shape = 'u32[144,128]{1,0:T(1,128)}', space=vmem, size = 0x12000, scoped, tag = 'internal scratch']
  #allocation2 [shape = 'f32[128,1]{1,0:T(8,128)}', space=vmem, size = 0x10000, scoped, tag = 'scratch operand']
  #allocation3 [shape = 'f32[128,1]{1,0:T(8,128)}', space=vmem, size = 0x10000, scoped, tag = 'scratch operand']
  %s0 = inlined_call_operand.hbm [shape: f32[2,128,256], index: 0, kind: input, shape index: {}]
  %s1 = inlined_call_operand.vmem [shape: f32[8,128], index: 1, kind: input, shape index: {}]
  %s2 = inlined_call_operand.vmem [shape: f32[128,8], index: 2, kind: input, shape index: {}]
  %s3 = inlined_call_operand.hbm [shape: f32[2,128,256], index: 3, kind: output, shape index: {}]
  %s4 = sld [smem:[#allocation0]]
  $region65: #{tpu_custom_call.1} parent=0
    _
  %s6 = ssub.s32 1, %s4
  %s7 = scalar_select 0, %s6, %s4
  $region1: #{tpu_custom_call.1} parent=0
    #allocation4 [shape = 'u8[262144]{0}', space=vmem, size = 0x40000, scoped, tag = 'input window, operand 0']
    #allocation5 [shape = 's32[2]{0}', space=sflag, size = 0x8, scoped, tag = 'scoped memory for tpu_custom_call.1']
    #allocation6 [shape = 's32[2]{0}', space=sflag, size = 0x8, scoped, tag = 'scoped memory for tpu_custom_call.1']
    #allocation7 [shape = 'u8[262144]{0}', space=vmem, size = 0x40000, scoped, tag = 'output window, operand 0']
    %8 = vsyncpa [#allocation5], 0
    %s9 = scalar_lea.sflag [#allocation5], 1
    %10 = vsyncpa %s9, 0
    %11 = vsyncpa [#allocation6], 0
    %s12 = scalar_lea.sflag [#allocation6], 1
    %13 = vsyncpa %s12, 0
    loop: start=0, step=1, limit=6
    $region2: #{tpu_custom_call.1} parent=1 // loop_pre_header
      _
    $region3: #{tpu_custom_call.1} parent=1 // loop_header
      %s15 = sphi 0, %s19
      %p16 = scmp.ge.s32.totalorder %s15, 6
      %s22 = sphi 0, %s34
      %s23 = sphi 0, %s30
      %s24 = sphi 0, %s22
      %s25 = sphi 0, %s23
      %s26 = sphi 0, %s24
      %s27 = sphi 0, %s25
      %s43 = sphi 0, %s45
      %s46 = sphi 0, %s43
      %s47 = sphi 0, %s46
      %s63 = sphi 0, %s47
      %s67 = sphi 0, %s67
      %s69 = sphi 0, %s67
      %s70 = sphi 0, %s69
      %s84 = sphi 0, %s70
      %s88 = sphi 0, %s88
      %s90 = sphi 0, %s88
      %s91 = sphi 0, %s90
      %s105 = sphi 0, %s91
      %s119 = sphi 0, %s121
      %s122 = sphi 0, %s119
      %s123 = sphi 0, %s122
      %s139 = sphi 0, %s123
    $region4: #{tpu_custom_call.1} parent=1 // loop_header_branch
      %18 = sbr.rel (%p16) target = $region8
    $region5: #{tpu_custom_call.1} parent=1 // loop_body
      %s20 = ssub.s32 %s15, 1
      %s21 = ssub.s32 %s15, 2
      %s28 = sadd.s32 1, %s23
      %p29 = scmp.ge.s32.totalorder %s28, 2
      %s30 = scalar_select %p29, 0, %s28
      %s31 = sadd.s32 1, %s22
      %s32 = scalar_select %p29, %s31, %s22
      %p33 = scmp.ge.s32.totalorder %s32, 2
      %s34 = scalar_select %p33, 0, %s32
      %p35 = scmp.lt.s32.totalorder %s23, 0
      %s36 = scalar_select %p35, %s23, 0
      %p37 = scmp.lt.s32.totalorder %s30, 0
      %s38 = scalar_select %p37, %s30, 0
      %s39 = ssub.s32 %s22, %s34
      %s40 = ssub.s32 %s36, %s38
      %s41 = sor.u32 %s39, %s40
      %p42 = scmp.eq.s32.totalorder %s41, 0
      %s44 = sadd.s32 %s43, 1
      %s45 = scalar_select %p42, %s43, %s44
      %p48 = pneg %p42
      %p49 = scmp.eq.s32.totalorder %s15, 3
      %p50 = por %p48, %p49
      %p51 = scmp.ne.s32.totalorder %s43, %s46
      %p52 = scmp.eq.s32.totalorder %s15, 0
      %p53 = por %p51, %p52
      %p54 = scmp.ne.s32.totalorder %s43, %s46
      %p55 = scmp.eq.s32.totalorder %s20, 3
      %p56 = por %p54, %p55
      %p57 = scmp.ne.s32.totalorder %s46, %s47
      %p58 = scmp.eq.s32.totalorder %s20, 0
      %p59 = por %p57, %p58
      %p60 = scmp.ne.s32.totalorder %s46, %s47
      %p61 = scmp.eq.s32.totalorder %s21, 3
      %p62 = por %p60, %p61
      %p64 = scmp.ne.s32.totalorder %s47, %s63
      %p65 = scmp.eq.s32.totalorder %s21, 0
      %p66 = por %p64, %p65
      %s68 = sadd.s32 %s67, 1
      %p71 = scmp.eq.s32.totalorder %s15, 3
      %p72 = scmp.ne.s32.totalorder %s67, %s69
      %p73 = scmp.eq.s32.totalorder %s15, 0
      %p74 = por %p72, %p73
      %p75 = scmp.ne.s32.totalorder %s67, %s69
      %p76 = scmp.eq.s32.totalorder %s20, 3
      %p77 = por %p75, %p76
      %p78 = scmp.ne.s32.totalorder %s69, %s70
      %p79 = scmp.eq.s32.totalorder %s20, 0
      %p80 = por %p78, %p79
      %p81 = scmp.ne.s32.totalorder %s69, %s70
      %p82 = scmp.eq.s32.totalorder %s21, 3
      %p83 = por %p81, %p82
      %p85 = scmp.ne.s32.totalorder %s70, %s84
      %p86 = scmp.eq.s32.totalorder %s21, 0
      %p87 = por %p85, %p86
      %s89 = sadd.s32 %s88, 1
      %p92 = scmp.eq.s32.totalorder %s15, 3
      %p93 = scmp.ne.s32.totalorder %s88, %s90
      %p94 = scmp.eq.s32.totalorder %s15, 0
      %p95 = por %p93, %p94
      %p96 = scmp.ne.s32.totalorder %s88, %s90
      %p97 = scmp.eq.s32.totalorder %s20, 3
      %p98 = por %p96, %p97
      %p99 = scmp.ne.s32.totalorder %s90, %s91
      %p100 = scmp.eq.s32.totalorder %s20, 0
      %p101 = por %p99, %p100
      %p102 = scmp.ne.s32.totalorder %s90, %s91
      %p103 = scmp.eq.s32.totalorder %s21, 3
      %p104 = por %p102, %p103
      %p106 = scmp.ne.s32.totalorder %s91, %s105
      %p107 = scmp.eq.s32.totalorder %s21, 0
      %p108 = por %p106, %p107
      %s109 = ssub.s32 %s23, 1
      %p110 = scmp.gt.s32.totalorder %s109, 0
      %s111 = scalar_select %p110, %s109, 0
      %s112 = ssub.s32 %s30, 1
      %p113 = scmp.gt.s32.totalorder %s112, 0
      %s114 = scalar_select %p113, %s112, 0
      %s115 = ssub.s32 %s22, %s34
      %s116 = ssub.s32 %s111, %s114
      %s117 = sor.u32 %s115, %s116
      %p118 = scmp.eq.s32.totalorder %s117, 0
      %s120 = sadd.s32 %s119, 1
      %s121 = scalar_select %p118, %s119, %s120
      %p124 = pneg %p118
      %p125 = scmp.eq.s32.totalorder %s15, 3
      %p126 = por %p124, %p125
      %p127 = scmp.ne.s32.totalorder %s119, %s122
      %p128 = scmp.eq.s32.totalorder %s15, 0
      %p129 = por %p127, %p128
      %p130 = scmp.ne.s32.totalorder %s119, %s122
      %p131 = scmp.eq.s32.totalorder %s20, 3
      %p132 = por %p130, %p131
      %p133 = scmp.ne.s32.totalorder %s122, %s123
      %p134 = scmp.eq.s32.totalorder %s20, 0
      %p135 = por %p133, %p134
      %p136 = scmp.ne.s32.totalorder %s122, %s123
      %p137 = scmp.eq.s32.totalorder %s21, 3
      %p138 = por %p136, %p137
      %p140 = scmp.ne.s32.totalorder %s123, %s139
      %p141 = scmp.eq.s32.totalorder %s21, 0
      %p142 = por %p140, %p141
      %p143 = scmp.le.s32.totalorder 1, %s15
      %p144 = scmp.lt.s32.totalorder %s15, 5
      %p145 = pnand %p143, %p144
      %p146 = pneg %p145
      // Predicated region
      $region9: #{tpu_custom_call.1} parent=5 // pred_check
        _
      $region10: #{tpu_custom_call.1} parent=5 // pred_check_branch
        %148 = sbr.rel (%p145) target = $region12
      $region11: #{tpu_custom_call.1} parent=5 // pred_region
        %s149 = ssub.s32 %s15, 1
        // Predicated region
        $region13: #{tpu_custom_call.1} parent=11 // pred_check
          %p150 = pneg %p80
        $region14: #{tpu_custom_call.1} parent=11 // pred_check_branch
          %152 = sbr.rel (%p150) target = $region16
        $region15: #{tpu_custom_call.1} parent=11 // pred_region
          _
        $region16: #{tpu_custom_call.1} parent=11 // pred_fallthru
          _
        // Predicated region
        $region17: #{tpu_custom_call.1} parent=11 // pred_check
          %p153 = pneg %p101
        $region18: #{tpu_custom_call.1} parent=11 // pred_check_branch
          %155 = sbr.rel (%p153) target = $region20
        $region19: #{tpu_custom_call.1} parent=11 // pred_region
          _
        $region20: #{tpu_custom_call.1} parent=11 // pred_fallthru
          _
      $region12: #{tpu_custom_call.1} parent=5 // pred_fallthru
        _
      %p156 = scmp.lt.s32.totalorder %s15, 4
      // Predicated region
      $region21: #{tpu_custom_call.1} parent=5 // pred_check
        %p157 = pneg %p156
      $region22: #{tpu_custom_call.1} parent=5 // pred_check_branch
        %159 = sbr.rel (%p157) target = $region24
      $region23: #{tpu_custom_call.1} parent=5 // pred_region
        // Predicated region
        $region25: #{tpu_custom_call.1} parent=23 // pred_check
          %p160 = pneg %p53
        $region26: #{tpu_custom_call.1} parent=23 // pred_check_branch
          %162 = sbr.rel (%p160) target = $region28
        $region27: #{tpu_custom_call.1} parent=23 // pred_region
          %s163 = sand.u32 %s43, 1
          %s164 = scalar_lea.sflag [#allocation5], %s163
          %s165 = sand.u32 %s43, 1
          %s166 = smul.addr %s165, 256
          %s167 = scalar_lea.vmem [#allocation4], %s166
          %p168 = scmp.lt.s32.totalorder %s23, 0
          %s169 = scalar_select %p168, %s23, 0
          %s170 = smul.u32 2, %s169
          %s172 = ssub.s32 4096, 4096
          %173 = vsyncadd %s164, %s172
          %s174 = smul.addr %s22, 32
          %s175 = sadd.s32 %s170, %s174
          %s176 = smul.addr %s175, 128
          %s177 = scalar_lea.hbm %s0, %s176
          %s178 = sshll.u32 %s167, 4
          %s179 = int_to_ptr.vmem [resolvable:$true] %s178
          %184 = dma.hbm_to_vmem [thread:$0]  %s177, 4096, %s179, %s164, 256, 256, 16
        $region28: #{tpu_custom_call.1} parent=23 // pred_fallthru
          _
      $region24: #{tpu_custom_call.1} parent=5 // pred_fallthru
        _
      %p185 = scmp.le.s32.totalorder 1, %s15
      %p186 = scmp.lt.s32.totalorder %s15, 5
      %p187 = pnand %p185, %p186
      %p188 = pneg %p187
      // Predicated region
      $region29: #{tpu_custom_call.1} parent=5 // pred_check
        _
      $region30: #{tpu_custom_call.1} parent=5 // pred_check_branch
        %190 = sbr.rel (%p187) target = $region32
      $region31: #{tpu_custom_call.1} parent=5 // pred_region
        %s191 = ssub.s32 %s15, 1
        %s192 = sand.u32 %s46, 1
        %s193 = scalar_lea.sflag [#allocation5], %s192
        %s194 = sand.u32 %s46, 1
        %s195 = smul.addr %s194, 256
        %s196 = scalar_lea.vmem [#allocation4], %s195
        // Predicated region
        $region33: #{tpu_custom_call.1} parent=31 // pred_check
          %p197 = pneg %p59
        $region34: #{tpu_custom_call.1} parent=31 // pred_check_branch
          %199 = sbr.rel (%p197) target = $region36
        $region35: #{tpu_custom_call.1} parent=31 // pred_region
          %200 = dma.done %s193, 4096
        $region36: #{tpu_custom_call.1} parent=31 // pred_fallthru
          _
        %s201 = sand.u32 %s46, 1
        %s202 = scalar_lea.sflag [#allocation5], %s201
        %s203 = sand.u32 %s46, 1
        %s204 = smul.addr %s203, 256
        %s205 = scalar_lea.vmem [#allocation4], %s204
        %p206 = pneg %p59
        %p207 = pneg %p56
        %p208 = pneg %p80
        %p209 = pneg %p77
        %p210 = pneg %p101
        %p211 = pneg %p98
        %p212 = pneg %p135
        %p213 = pneg %p132
        %s214 = sand.u32 %s122, 1
        %s215 = scalar_lea.sflag [#allocation6], %s214
        %s216 = sand.u32 %s122, 1
        %s217 = smul.addr %s216, 256
        %s218 = scalar_lea.vmem [#allocation7], %s217
        %p219 = scmp.lt.s32.totalorder %s25, 0
        %s220 = scalar_select %p219, %s25, 0
        %s221 = smul.u32 2, %s220
        %s222 = ssub.s32 %s25, 1
        %p223 = scmp.gt.s32.totalorder %s222, 0
        %s224 = scalar_select %p223, %s222, 0
        %s225 = smul.u32 2, %s224
        %p226 = scmp.eq.s32.totalorder %s25, 0
        // Predicated region
        $region37: #{tpu_custom_call.1} parent=31 // pred_check
          %p227 = pneg %p226
        $region38: #{tpu_custom_call.1} parent=31 // pred_check_branch
          %229 = sbr.rel (%p227) target = $region40
        $region39: #{tpu_custom_call.1} parent=31 // pred_region
          %vm230 = vcmask 7168
          %231 = vst.msk [vmem:[#allocation2] sm:$0xff] %vm230, 0.0
          %232 = vst.msk [vmem:[#allocation2 + $0x8] sm:$0xff] %vm230, 0.0
          %233 = vst.msk [vmem:[#allocation2 + $0x10] sm:$0xff] %vm230, 0.0
          %234 = vst.msk [vmem:[#allocation2 + $0x18] sm:$0xff] %vm230, 0.0
          %235 = vst.msk [vmem:[#allocation2 + $0x20] sm:$0xff] %vm230, 0.0
          %236 = vst.msk [vmem:[#allocation2 + $0x28] sm:$0xff] %vm230, 0.0
          %237 = vst.msk [vmem:[#allocation2 + $0x30] sm:$0xff] %vm230, 0.0
          %238 = vst.msk [vmem:[#allocation2 + $0x38] sm:$0xff] %vm230, 0.0
          %239 = vst.msk [vmem:[#allocation2 + $0x40] sm:$0xff] %vm230, 0.0
          %240 = vst.msk [vmem:[#allocation2 + $0x48] sm:$0xff] %vm230, 0.0
          %241 = vst.msk [vmem:[#allocation2 + $0x50] sm:$0xff] %vm230, 0.0
          %242 = vst.msk [vmem:[#allocation2 + $0x58] sm:$0xff] %vm230, 0.0
          %243 = vst.msk [vmem:[#allocation2 + $0x60] sm:$0xff] %vm230, 0.0
          %244 = vst.msk [vmem:[#allocation2 + $0x68] sm:$0xff] %vm230, 0.0
          %245 = vst.msk [vmem:[#allocation2 + $0x70] sm:$0xff] %vm230, 0.0
          %246 = vst.msk [vmem:[#allocation2 + $0x78] sm:$0xff] %vm230, 0.0
        $region40: #{tpu_custom_call.1} parent=31 // pred_fallthru
          _
        %p247 = scmp.lt.s32.totalorder %s25, 1
        // Predicated region
        $region41: #{tpu_custom_call.1} parent=31 // pred_check
          %p248 = pneg %p247
        $region42: #{tpu_custom_call.1} parent=31 // pred_check_branch
          %250 = sbr.rel (%p248) target = $region44
        $region43: #{tpu_custom_call.1} parent=31 // pred_region
          %v251 = vld [vmem:[%s196] sm:$0xff]
          %v252 = vld [vmem:[%s196 + $0x8] sm:$0xff]
          %v253 = vld [vmem:[%s196 + $0x10] sm:$0xff]
          %v254 = vld [vmem:[%s196 + $0x18] sm:$0xff]
          %v255 = vld [vmem:[%s196 + $0x20] sm:$0xff]
          %v256 = vld [vmem:[%s196 + $0x28] sm:$0xff]
          %v257 = vld [vmem:[%s196 + $0x30] sm:$0xff]
          %v258 = vld [vmem:[%s196 + $0x38] sm:$0xff]
          %v259 = vld [vmem:[%s196 + $0x40] sm:$0xff]
          %v260 = vld [vmem:[%s196 + $0x48] sm:$0xff]
          %v261 = vld [vmem:[%s196 + $0x50] sm:$0xff]
          %v262 = vld [vmem:[%s196 + $0x58] sm:$0xff]
          %v263 = vld [vmem:[%s196 + $0x60] sm:$0xff]
          %v264 = vld [vmem:[%s196 + $0x68] sm:$0xff]
          %v265 = vld [vmem:[%s196 + $0x70] sm:$0xff]
          %v266 = vld [vmem:[%s196 + $0x78] sm:$0xff]
          %v267 = vld [vmem:[%s196 + $0x80] sm:$0xff]
          %v268 = vld [vmem:[%s196 + $0x88] sm:$0xff]
          %v269 = vld [vmem:[%s196 + $0x90] sm:$0xff]
          %v270 = vld [vmem:[%s196 + $0x98] sm:$0xff]
          %v271 = vld [vmem:[%s196 + $0xa0] sm:$0xff]
          %v272 = vld [vmem:[%s196 + $0xa8] sm:$0xff]
          %v273 = vld [vmem:[%s196 + $0xb0] sm:$0xff]
          %v274 = vld [vmem:[%s196 + $0xb8] sm:$0xff]
          %v275 = vld [vmem:[%s196 + $0xc0] sm:$0xff]
          %v276 = vld [vmem:[%s196 + $0xc8] sm:$0xff]
          %v277 = vld [vmem:[%s196 + $0xd0] sm:$0xff]
          %v278 = vld [vmem:[%s196 + $0xd8] sm:$0xff]
          %v279 = vld [vmem:[%s196 + $0xe0] sm:$0xff]
          %v280 = vld [vmem:[%s196 + $0xe8] sm:$0xff]
          %v281 = vld [vmem:[%s196 + $0xf0] sm:$0xff]
          %v282 = vld [vmem:[%s196 + $0xf8] sm:$0xff]
          %v283 = vld [vmem:[#allocation2] sm:$0xff]
          %v284 = vld [vmem:[#allocation2 + $0x8] sm:$0xff]
          %v285 = vld [vmem:[#allocation2 + $0x10] sm:$0xff]
          %v286 = vld [vmem:[#allocation2 + $0x18] sm:$0xff]
          %v287 = vld [vmem:[#allocation2 + $0x20] sm:$0xff]
          %v288 = vld [vmem:[#allocation2 + $0x28] sm:$0xff]
          %v289 = vld [vmem:[#allocation2 + $0x30] sm:$0xff]
          %v290 = vld [vmem:[#allocation2 + $0x38] sm:$0xff]
          %v291 = vld [vmem:[#allocation2 + $0x40] sm:$0xff]
          %v292 = vld [vmem:[#allocation2 + $0x48] sm:$0xff]
          %v293 = vld [vmem:[#allocation2 + $0x50] sm:$0xff]
          %v294 = vld [vmem:[#allocation2 + $0x58] sm:$0xff]
          %v295 = vld [vmem:[#allocation2 + $0x60] sm:$0xff]
          %v296 = vld [vmem:[#allocation2 + $0x68] sm:$0xff]
          %v297 = vld [vmem:[#allocation2 + $0x70] sm:$0xff]
          %v298 = vld [vmem:[#allocation2 + $0x78] sm:$0xff]
          %v299 = vadd.f32 %v251, %v252
          %300 = vadd.xlane.f32.xlu0 %v299
          %v301 = vpop.xlane.xlu0 %300
          %v302 = vadd.f32 %v253, %v254
          %303 = vadd.xlane.f32.xlu0 %v302
          %v304 = vpop.xlane.xlu0 %303
          %v305 = vadd.f32 %v255, %v256
          %306 = vadd.xlane.f32.xlu0 %v305
          %v307 = vpop.xlane.xlu0 %306
          %v308 = vadd.f32 %v257, %v258
          %309 = vadd.xlane.f32.xlu0 %v308
          %v310 = vpop.xlane.xlu0 %309
          %v311 = vadd.f32 %v259, %v260
          %312 = vadd.xlane.f32.xlu0 %v311
          %v313 = vpop.xlane.xlu0 %312
          %v314 = vadd.f32 %v261, %v262
          %315 = vadd.xlane.f32.xlu0 %v314
          %v316 = vpop.xlane.xlu0 %315
          %v317 = vadd.f32 %v263, %v264
          %318 = vadd.xlane.f32.xlu0 %v317
          %v319 = vpop.xlane.xlu0 %318
          %v320 = vadd.f32 %v265, %v266
          %321 = vadd.xlane.f32.xlu0 %v320
          %v322 = vpop.xlane.xlu0 %321
          %v323 = vadd.f32 %v267, %v268
          %324 = vadd.xlane.f32.xlu0 %v323
          %v325 = vpop.xlane.xlu0 %324
          %v326 = vadd.f32 %v269, %v270
          %327 = vadd.xlane.f32.xlu0 %v326
          %v328 = vpop.xlane.xlu0 %327
          %v329 = vadd.f32 %v271, %v272
          %330 = vadd.xlane.f32.xlu0 %v329
          %v331 = vpop.xlane.xlu0 %330
          %v332 = vadd.f32 %v273, %v274
          %333 = vadd.xlane.f32.xlu0 %v332
          %v334 = vpop.xlane.xlu0 %333
          %v335 = vadd.f32 %v275, %v276
          %336 = vadd.xlane.f32.xlu0 %v335
          %v337 = vpop.xlane.xlu0 %336
          %v338 = vadd.f32 %v277, %v278
          %339 = vadd.xlane.f32.xlu0 %v338
          %v340 = vpop.xlane.xlu0 %339
          %v341 = vadd.f32 %v279, %v280
          %342 = vadd.xlane.f32.xlu0 %v341
          %v343 = vpop.xlane.xlu0 %342
          %v344 = vadd.f32 %v281, %v282
          %345 = vadd.xlane.f32.xlu0 %v344
          %v346 = vpop.xlane.xlu0 %345
          %v347 = vadd.f32 %v283, %v301
          %v348 = vadd.f32 %v284, %v304
          %v349 = vadd.f32 %v285, %v307
          %v350 = vadd.f32 %v286, %v310
          %v351 = vadd.f32 %v287, %v313
          %v352 = vadd.f32 %v288, %v316
          %v353 = vadd.f32 %v289, %v319
          %v354 = vadd.f32 %v290, %v322
          %v355 = vadd.f32 %v291, %v325
          %v356 = vadd.f32 %v292, %v328
          %v357 = vadd.f32 %v293, %v331
          %v358 = vadd.f32 %v294, %v334
          %v359 = vadd.f32 %v295, %v337
          %v360 = vadd.f32 %v296, %v340
          %v361 = vadd.f32 %v297, %v343
          %v362 = vadd.f32 %v298, %v346
          %vm363 = vcmask 7168
          %364 = vst.msk [vmem:[#allocation2] sm:$0xff] %vm363, %v347
          %365 = vst.msk [vmem:[#allocation2 + $0x8] sm:$0xff] %vm363, %v348
          %366 = vst.msk [vmem:[#allocation2 + $0x10] sm:$0xff] %vm363, %v349
          %367 = vst.msk [vmem:[#allocation2 + $0x18] sm:$0xff] %vm363, %v350
          %368 = vst.msk [vmem:[#allocation2 + $0x20] sm:$0xff] %vm363, %v351
          %369 = vst.msk [vmem:[#allocation2 + $0x28] sm:$0xff] %vm363, %v352
          %370 = vst.msk [vmem:[#allocation2 + $0x30] sm:$0xff] %vm363, %v353
          %371 = vst.msk [vmem:[#allocation2 + $0x38] sm:$0xff] %vm363, %v354
          %372 = vst.msk [vmem:[#allocation2 + $0x40] sm:$0xff] %vm363, %v355
          %373 = vst.msk [vmem:[#allocation2 + $0x48] sm:$0xff] %vm363, %v356
          %374 = vst.msk [vmem:[#allocation2 + $0x50] sm:$0xff] %vm363, %v357
          %375 = vst.msk [vmem:[#allocation2 + $0x58] sm:$0xff] %vm363, %v358
          %376 = vst.msk [vmem:[#allocation2 + $0x60] sm:$0xff] %vm363, %v359
          %377 = vst.msk [vmem:[#allocation2 + $0x68] sm:$0xff] %vm363, %v360
          %378 = vst.msk [vmem:[#allocation2 + $0x70] sm:$0xff] %vm363, %v361
          %379 = vst.msk [vmem:[#allocation2 + $0x78] sm:$0xff] %vm363, %v362
        $region44: #{tpu_custom_call.1} parent=31 // pred_fallthru
          _
        %p380 = scmp.ge.s32.totalorder %s25, 1
        // Predicated region
        $region45: #{tpu_custom_call.1} parent=31 // pred_check
          %p381 = pneg %p380
        $region46: #{tpu_custom_call.1} parent=31 // pred_check_branch
          %383 = sbr.rel (%p381) target = $region48
        $region47: #{tpu_custom_call.1} parent=31 // pred_region
          %s384 = ssub.s32 %s25, 1
          %p385 = scmp.eq.s32.totalorder %s384, 0
          // Predicated region
          $region49: #{tpu_custom_call.1} parent=47 // pred_check
            %p386 = pneg %p385
          $region50: #{tpu_custom_call.1} parent=47 // pred_check_branch
            %388 = sbr.rel (%p386) target = $region52
          $region51: #{tpu_custom_call.1} parent=47 // pred_region
            %v389 = vld [vmem:[#allocation2] sm:$0xff]
            %v390 = vld [vmem:[#allocation2 + $0x8] sm:$0xff]
            %v391 = vld [vmem:[#allocation2 + $0x10] sm:$0xff]
            %v392 = vld [vmem:[#allocation2 + $0x18] sm:$0xff]
            %v393 = vld [vmem:[#allocation2 + $0x20] sm:$0xff]
            %v394 = vld [vmem:[#allocation2 + $0x28] sm:$0xff]
            %v395 = vld [vmem:[#allocation2 + $0x30] sm:$0xff]
            %v396 = vld [vmem:[#allocation2 + $0x38] sm:$0xff]
            %v397 = vld [vmem:[#allocation2 + $0x40] sm:$0xff]
            %v398 = vld [vmem:[#allocation2 + $0x48] sm:$0xff]
            %v399 = vld [vmem:[#allocation2 + $0x50] sm:$0xff]
            %v400 = vld [vmem:[#allocation2 + $0x58] sm:$0xff]
            %v401 = vld [vmem:[#allocation2 + $0x60] sm:$0xff]
            %v402 = vld [vmem:[#allocation2 + $0x68] sm:$0xff]
            %v403 = vld [vmem:[#allocation2 + $0x70] sm:$0xff]
            %v404 = vld [vmem:[#allocation2 + $0x78] sm:$0xff]
            %v405 = vmul.f32 %v389, 0.00390625
            %v406 = vmul.f32 %v390, 0.00390625
            %v407 = vmul.f32 %v391, 0.00390625
            %v408 = vmul.f32 %v392, 0.00390625
            %v409 = vmul.f32 %v393, 0.00390625
            %v410 = vmul.f32 %v394, 0.00390625
            %v411 = vmul.f32 %v395, 0.00390625
            %v412 = vmul.f32 %v396, 0.00390625
            %v413 = vmul.f32 %v397, 0.00390625
            %v414 = vmul.f32 %v398, 0.00390625
            %v415 = vmul.f32 %v399, 0.00390625
            %v416 = vmul.f32 %v400, 0.00390625
            %v417 = vmul.f32 %v401, 0.00390625
            %v418 = vmul.f32 %v402, 0.00390625
            %v419 = vmul.f32 %v403, 0.00390625
            %v420 = vmul.f32 %v404, 0.00390625
            %v421 = vld [vmem:[%s1] sm:$0xff]
            %422 = vmatprep.subr.mxu0 0.0
            %423 = vmatpush1.msra.mxu0 %v405
            %424 = vmatprep.subr.mxu0 0.0
            %425 = vmatpush1.msra.mxu0 %v406
            %426 = vmatprep.subr.mxu0 0.0
            %427 = vmatpush1.msra.mxu0 %v407
            %428 = vmatprep.subr.mxu0 0.0
            %429 = vmatpush1.msra.mxu0 %v408
            %430 = vmatprep.subr.mxu0 0.0
            %431 = vmatpush1.msra.mxu0 %v409
            %432 = vmatprep.subr.mxu0 0.0
            %433 = vmatpush1.msra.mxu0 %v410
            %434 = vmatprep.subr.mxu0 0.0
            %435 = vmatpush1.msra.mxu0 %v411
            %436 = vmatprep.subr.mxu0 0.0
            %437 = vmatpush1.msra.mxu0 %v412
            %438 = vmatprep.subr.mxu0 0.0
            %439 = vmatpush1.msra.mxu0 %v413
            %440 = vmatprep.subr.mxu0 0.0
            %441 = vmatpush1.msra.mxu0 %v414
            %442 = vmatprep.subr.mxu0 0.0
            %443 = vmatpush1.msra.mxu0 %v415
            %444 = vmatprep.subr.mxu0 0.0
            %445 = vmatpush1.msra.mxu0 %v416
            %446 = vmatprep.subr.mxu0 0.0
            %447 = vmatpush1.msra.mxu0 %v417
            %448 = vmatprep.subr.mxu0 0.0
            %449 = vmatpush1.msra.mxu0 %v418
            %450 = vmatprep.subr.mxu0 0.0
            %451 = vmatpush1.msra.mxu0 %v419
            %452 = vmatprep.subr.mxu0 0.0
            %453 = vmatpush1.msra.mxu0 %v420
            %454 = vmatprep.subr.mxu0 0.0
            %455 = vmatpush1.msra.mxu0 0.0
            %456 = vmatprep.subr.mxu0 0.0
            %457 = vmatpush1.msra.mxu0 0.0
            %458 = vmatprep.subr.mxu0 0.0
            %459 = vmatpush1.msra.mxu0 0.0
            %460 = vmatprep.subr.mxu0 0.0
            %461 = vmatpush1.msra.mxu0 0.0
            %462 = vmatprep.subr.mxu0 0.0
            %463 = vmatpush1.msra.mxu0 0.0
            %464 = vmatprep.subr.mxu0 0.0
            %465 = vmatpush1.msra.mxu0 0.0
            %466 = vmatprep.subr.mxu0 0.0
            %467 = vmatpush1.msra.mxu0 0.0
            %468 = vmatprep.subr.mxu0 0.0
            %469 = vmatpush1.msra.mxu0 0.0
            %470 = vmatprep.subr.mxu0 0.0
            %471 = vmatpush1.msra.mxu0 0.0
            %472 = vmatprep.subr.mxu0 0.0
            %473 = vmatpush1.msra.mxu0 0.0
            %474 = vmatprep.subr.mxu0 0.0
            %475 = vmatpush1.msra.mxu0 0.0
            %476 = vmatprep.subr.mxu0 0.0
            %477 = vmatpush1.msra.mxu0 0.0
            %478 = vmatprep.subr.mxu0 0.0
            %479 = vmatpush1.msra.mxu0 0.0
            %480 = vmatprep.subr.mxu0 0.0
            %481 = vmatpush1.msra.mxu0 0.0
            %482 = vmatprep.subr.mxu0 0.0
            %483 = vmatpush1.msra.mxu0 0.0
            %484 = vmatprep.subr.mxu0 0.0
            %485 = vmatpush1.msra.mxu0 0.0
            %486 = vmatprep.mubr.f32.mxu0 0.0
            %487 = vmatmul.mubr.f32.gmra.mrb[0].mxu0 %v421
            %v488 = vpop.f32.mrb[0].mxu0
            %v489 = vadd.f32 0.0, %v488
            %v490 = vpop.f32.mrb[0].mxu0
            %491 = vdwg.mxu0
            %v492 = vmax.f32 %v489, 0.0
            %v493 = vld [vmem:[%s2] sm:$0xff]
            %v494 = vld [vmem:[%s2 + $0x8] sm:$0xff]
            %v495 = vld [vmem:[%s2 + $0x10] sm:$0xff]
            %v496 = vld [vmem:[%s2 + $0x18] sm:$0xff]
            %v497 = vld [vmem:[%s2 + $0x20] sm:$0xff]
            %v498 = vld [vmem:[%s2 + $0x28] sm:$0xff]
            %v499 = vld [vmem:[%s2 + $0x30] sm:$0xff]
            %v500 = vld [vmem:[%s2 + $0x38] sm:$0xff]
            %v501 = vld [vmem:[%s2 + $0x40] sm:$0xff]
            %v502 = vld [vmem:[%s2 + $0x48] sm:$0xff]
            %v503 = vld [vmem:[%s2 + $0x50] sm:$0xff]
            %v504 = vld [vmem:[%s2 + $0x58] sm:$0xff]
            %v505 = vld [vmem:[%s2 + $0x60] sm:$0xff]
            %v506 = vld [vmem:[%s2 + $0x68] sm:$0xff]
            %v507 = vld [vmem:[%s2 + $0x70] sm:$0xff]
            %v508 = vld [vmem:[%s2 + $0x78] sm:$0xff]
            %vm509 = vcmask 64512
            %v511 = vsel %vm509, %v493, 0
            %v514 = vsel %vm509, %v494, 0
            %v517 = vsel %vm509, %v495, 0
            %v520 = vsel %vm509, %v496, 0
            %v523 = vsel %vm509, %v497, 0
            %v526 = vsel %vm509, %v498, 0
            %v529 = vsel %vm509, %v499, 0
            %v532 = vsel %vm509, %v500, 0
            %v535 = vsel %vm509, %v501, 0
            %v538 = vsel %vm509, %v502, 0
            %v541 = vsel %vm509, %v503, 0
            %v544 = vsel %vm509, %v504, 0
            %v547 = vsel %vm509, %v505, 0
            %v550 = vsel %vm509, %v506, 0
            %v553 = vsel %vm509, %v507, 0
            %v556 = vsel %vm509, %v508, 0
            %558 = vmatprep.subr.mxu0 0.0
            %559 = vmatpush1.msra.mxu0 %v492
            %560 = vmatprep.subr.mxu0 0.0
            %561 = vmatpush1.msra.mxu0 0.0
            %562 = vmatprep.subr.mxu0 0.0
            %563 = vmatpush1.msra.mxu0 0.0
            %564 = vmatprep.subr.mxu0 0.0
            %565 = vmatpush1.msra.mxu0 0.0
            %566 = vmatprep.subr.mxu0 0.0
            %567 = vmatpush1.msra.mxu0 0.0
            %568 = vmatprep.subr.mxu0 0.0
            %569 = vmatpush1.msra.mxu0 0.0
            %570 = vmatprep.subr.mxu0 0.0
            %571 = vmatpush1.msra.mxu0 0.0
            %572 = vmatprep.subr.mxu0 0.0
            %573 = vmatpush1.msra.mxu0 0.0
            %574 = vmatprep.subr.mxu0 0.0
            %575 = vmatpush1.msra.mxu0 0.0
            %576 = vmatprep.subr.mxu0 0.0
            %577 = vmatpush1.msra.mxu0 0.0
            %578 = vmatprep.subr.mxu0 0.0
            %579 = vmatpush1.msra.mxu0 0.0
            %580 = vmatprep.subr.mxu0 0.0
            %581 = vmatpush1.msra.mxu0 0.0
            %582 = vmatprep.subr.mxu0 0.0
            %583 = vmatpush1.msra.mxu0 0.0
            %584 = vmatprep.subr.mxu0 0.0
            %585 = vmatpush1.msra.mxu0 0.0
            %586 = vmatprep.subr.mxu0 0.0
            %587 = vmatpush1.msra.mxu0 0.0
            %588 = vmatprep.subr.mxu0 0.0
            %589 = vmatpush1.msra.mxu0 0.0
            %590 = vmatprep.subr.mxu0 0.0
            %591 = vmatpush1.msra.mxu0 0.0
            %592 = vmatprep.subr.mxu0 0.0
            %593 = vmatpush1.msra.mxu0 0.0
            %594 = vmatprep.subr.mxu0 0.0
            %595 = vmatpush1.msra.mxu0 0.0
            %596 = vmatprep.subr.mxu0 0.0
            %597 = vmatpush1.msra.mxu0 0.0
            %598 = vmatprep.subr.mxu0 0.0
            %599 = vmatpush1.msra.mxu0 0.0
            %600 = vmatprep.subr.mxu0 0.0
            %601 = vmatpush1.msra.mxu0 0.0
            %602 = vmatprep.subr.mxu0 0.0
            %603 = vmatpush1.msra.mxu0 0.0
            %604 = vmatprep.subr.mxu0 0.0
            %605 = vmatpush1.msra.mxu0 0.0
            %606 = vmatprep.subr.mxu0 0.0
            %607 = vmatpush1.msra.mxu0 0.0
            %608 = vmatprep.subr.mxu0 0.0
            %609 = vmatpush1.msra.mxu0 0.0
            %610 = vmatprep.subr.mxu0 0.0
            %611 = vmatpush1.msra.mxu0 0.0
            %612 = vmatprep.subr.mxu0 0.0
            %613 = vmatpush1.msra.mxu0 0.0
            %614 = vmatprep.subr.mxu0 0.0
            %615 = vmatpush1.msra.mxu0 0.0
            %616 = vmatprep.subr.mxu0 0.0
            %617 = vmatpush1.msra.mxu0 0.0
            %618 = vmatprep.subr.mxu0 0.0
            %619 = vmatpush1.msra.mxu0 0.0
            %620 = vmatprep.subr.mxu0 0.0
            %621 = vmatpush1.msra.mxu0 0.0
            %622 = vmatprep.mubr.f32.mxu0 0.0
            %623 = vmatmul.mubr.f32.gmra.mrb[0].mxu0 %v511
            %v624 = vpop.f32.mrb[0].mxu0
            %v625 = vadd.f32 0.0, %v624
            %v626 = vpop.f32.mrb[0].mxu0
            %627 = vmatprep.mubr.f32.mxu0 0.0
            %628 = vmatmul.mubr.f32.gmra.mrb[0].mxu0 %v514
            %v629 = vpop.f32.mrb[0].mxu0
            %v630 = vadd.f32 0.0, %v629
            %v631 = vpop.f32.mrb[0].mxu0
            %632 = vmatprep.mubr.f32.mxu0 0.0
            %633 = vmatmul.mubr.f32.gmra.mrb[0].mxu0 %v517
            %v634 = vpop.f32.mrb[0].mxu0
            %v635 = vadd.f32 0.0, %v634
            %v636 = vpop.f32.mrb[0].mxu0
            %637 = vmatprep.mubr.f32.mxu0 0.0
            %638 = vmatmul.mubr.f32.gmra.mrb[0].mxu0 %v520
            %v639 = vpop.f32.mrb[0].mxu0
            %v640 = vadd.f32 0.0, %v639
            %v641 = vpop.f32.mrb[0].mxu0
            %642 = vmatprep.mubr.f32.mxu0 0.0
            %643 = vmatmul.mubr.f32.gmra.mrb[0].mxu0 %v523
            %v644 = vpop.f32.mrb[0].mxu0
            %v645 = vadd.f32 0.0, %v644
            %v646 = vpop.f32.mrb[0].mxu0
            %647 = vmatprep.mubr.f32.mxu0 0.0
            %648 = vmatmul.mubr.f32.gmra.mrb[0].mxu0 %v526
            %v649 = vpop.f32.mrb[0].mxu0
            %v650 = vadd.f32 0.0, %v649
            %v651 = vpop.f32.mrb[0].mxu0
            %652 = vmatprep.mubr.f32.mxu0 0.0
            %653 = vmatmul.mubr.f32.gmra.mrb[0].mxu0 %v529
            %v654 = vpop.f32.mrb[0].mxu0
            %v655 = vadd.f32 0.0, %v654
            %v656 = vpop.f32.mrb[0].mxu0
            %657 = vmatprep.mubr.f32.mxu0 0.0
            %658 = vmatmul.mubr.f32.gmra.mrb[0].mxu0 %v532
            %v659 = vpop.f32.mrb[0].mxu0
            %v660 = vadd.f32 0.0, %v659
            %v661 = vpop.f32.mrb[0].mxu0
            %662 = vmatprep.mubr.f32.mxu0 0.0
            %663 = vmatmul.mubr.f32.gmra.mrb[0].mxu0 %v535
            %v664 = vpop.f32.mrb[0].mxu0
            %v665 = vadd.f32 0.0, %v664
            %v666 = vpop.f32.mrb[0].mxu0
            %667 = vmatprep.mubr.f32.mxu0 0.0
            %668 = vmatmul.mubr.f32.gmra.mrb[0].mxu0 %v538
            %v669 = vpop.f32.mrb[0].mxu0
            %v670 = vadd.f32 0.0, %v669
            %v671 = vpop.f32.mrb[0].mxu0
            %672 = vmatprep.mubr.f32.mxu0 0.0
            %673 = vmatmul.mubr.f32.gmra.mrb[0].mxu0 %v541
            %v674 = vpop.f32.mrb[0].mxu0
            %v675 = vadd.f32 0.0, %v674
            %v676 = vpop.f32.mrb[0].mxu0
            %677 = vmatprep.mubr.f32.mxu0 0.0
            %678 = vmatmul.mubr.f32.gmra.mrb[0].mxu0 %v544
            %v679 = vpop.f32.mrb[0].mxu0
            %v680 = vadd.f32 0.0, %v679
            %v681 = vpop.f32.mrb[0].mxu0
            %682 = vmatprep.mubr.f32.mxu0 0.0
            %683 = vmatmul.mubr.f32.gmra.mrb[0].mxu0 %v547
            %v684 = vpop.f32.mrb[0].mxu0
            %v685 = vadd.f32 0.0, %v684
            %v686 = vpop.f32.mrb[0].mxu0
            %687 = vmatprep.mubr.f32.mxu0 0.0
            %688 = vmatmul.mubr.f32.gmra.mrb[0].mxu0 %v550
            %v689 = vpop.f32.mrb[0].mxu0
            %v690 = vadd.f32 0.0, %v689
            %v691 = vpop.f32.mrb[0].mxu0
            %692 = vmatprep.mubr.f32.mxu0 0.0
            %693 = vmatmul.mubr.f32.gmra.mrb[0].mxu0 %v553
            %v694 = vpop.f32.mrb[0].mxu0
            %v695 = vadd.f32 0.0, %v694
            %v696 = vpop.f32.mrb[0].mxu0
            %697 = vmatprep.mubr.f32.mxu0 0.0
            %698 = vmatmul.mubr.f32.gmra.mrb[0].mxu0 %v556
            %v699 = vpop.f32.mrb[0].mxu0
            %v700 = vadd.f32 0.0, %v699
            %v701 = vpop.f32.mrb[0].mxu0
            %702 = vdwg.mxu0
            %v703 = vsub.f32 0.0, %v625
            %v704 = vsub.f32 0.0, %v630
            %v705 = vsub.f32 0.0, %v635
            %v706 = vsub.f32 0.0, %v640
            %v707 = vsub.f32 0.0, %v645
            %v708 = vsub.f32 0.0, %v650
            %v709 = vsub.f32 0.0, %v655
            %v710 = vsub.f32 0.0, %v660
            %v711 = vsub.f32 0.0, %v665
            %v712 = vsub.f32 0.0, %v670
            %v713 = vsub.f32 0.0, %v675
            %v714 = vsub.f32 0.0, %v680
            %v715 = vsub.f32 0.0, %v685
            %v716 = vsub.f32 0.0, %v690
            %v717 = vsub.f32 0.0, %v695
            %v718 = vsub.f32 0.0, %v700
            %v719 = vmul.f32 %v703, 1.442695
            %v720 = vpow.pop %v719
            %v721 = vmul.f32 %v704, 1.442695
            %v722 = vpow.pop %v721
            %v723 = vmul.f32 %v705, 1.442695
            %v724 = vpow.pop %v723
            %v725 = vmul.f32 %v706, 1.442695
            %v726 = vpow.pop %v725
            %v727 = vmul.f32 %v707, 1.442695
            %v728 = vpow.pop %v727
            %v729 = vmul.f32 %v708, 1.442695
            %v730 = vpow.pop %v729
            %v731 = vmul.f32 %v709, 1.442695
            %v732 = vpow.pop %v731
            %v733 = vmul.f32 %v710, 1.442695
            %v734 = vpow.pop %v733
            %v735 = vmul.f32 %v711, 1.442695
            %v736 = vpow.pop %v735
            %v737 = vmul.f32 %v712, 1.442695
            %v738 = vpow.pop %v737
            %v739 = vmul.f32 %v713, 1.442695
            %v740 = vpow.pop %v739
            %v741 = vmul.f32 %v714, 1.442695
            %v742 = vpow.pop %v741
            %v743 = vmul.f32 %v715, 1.442695
            %v744 = vpow.pop %v743
            %v745 = vmul.f32 %v716, 1.442695
            %v746 = vpow.pop %v745
            %v747 = vmul.f32 %v717, 1.442695
            %v748 = vpow.pop %v747
            %v749 = vmul.f32 %v718, 1.442695
            %v750 = vpow.pop %v749
            %v751 = vadd.f32 %v720, 1.0
            %v752 = vadd.f32 %v722, 1.0
            %v753 = vadd.f32 %v724, 1.0
            %v754 = vadd.f32 %v726, 1.0
            %v755 = vadd.f32 %v728, 1.0
            %v756 = vadd.f32 %v730, 1.0
            %v757 = vadd.f32 %v732, 1.0
            %v758 = vadd.f32 %v734, 1.0
            %v759 = vadd.f32 %v736, 1.0
            %v760 = vadd.f32 %v738, 1.0
            %v761 = vadd.f32 %v740, 1.0
            %v762 = vadd.f32 %v742, 1.0
            %v763 = vadd.f32 %v744, 1.0
            %v764 = vadd.f32 %v746, 1.0
            %v765 = vadd.f32 %v748, 1.0
            %v766 = vadd.f32 %v750, 1.0
            %v767 = vrcp.pop %v751
            %v768 = vmul.f32 1.0, %v767
            %v769 = vrcp.pop %v752
            %v770 = vmul.f32 1.0, %v769
            %v771 = vrcp.pop %v753
            %v772 = vmul.f32 1.0, %v771
            %v773 = vrcp.pop %v754
            %v774 = vmul.f32 1.0, %v773
            %v775 = vrcp.pop %v755
            %v776 = vmul.f32 1.0, %v775
            %v777 = vrcp.pop %v756
            %v778 = vmul.f32 1.0, %v777
            %v779 = vrcp.pop %v757
            %v780 = vmul.f32 1.0, %v779
            %v781 = vrcp.pop %v758
            %v782 = vmul.f32 1.0, %v781
            %v783 = vrcp.pop %v759
            %v784 = vmul.f32 1.0, %v783
            %v785 = vrcp.pop %v760
            %v786 = vmul.f32 1.0, %v785
            %v787 = vrcp.pop %v761
            %v788 = vmul.f32 1.0, %v787
            %v789 = vrcp.pop %v762
            %v790 = vmul.f32 1.0, %v789
            %v791 = vrcp.pop %v763
            %v792 = vmul.f32 1.0, %v791
            %v793 = vrcp.pop %v764
            %v794 = vmul.f32 1.0, %v793
            %v795 = vrcp.pop %v765
            %v796 = vmul.f32 1.0, %v795
            %v797 = vrcp.pop %v766
            %v798 = vmul.f32 1.0, %v797
            %vm799 = vcmask 7168
            %800 = vst.msk [vmem:[#allocation3] sm:$0xff] %vm799, %v768
            %801 = vst.msk [vmem:[#allocation3 + $0x8] sm:$0xff] %vm799, %v770
            %802 = vst.msk [vmem:[#allocation3 + $0x10] sm:$0xff] %vm799, %v772
            %803 = vst.msk [vmem:[#allocation3 + $0x18] sm:$0xff] %vm799, %v774
            %804 = vst.msk [vmem:[#allocation3 + $0x20] sm:$0xff] %vm799, %v776
            %805 = vst.msk [vmem:[#allocation3 + $0x28] sm:$0xff] %vm799, %v778
            %806 = vst.msk [vmem:[#allocation3 + $0x30] sm:$0xff] %vm799, %v780
            %807 = vst.msk [vmem:[#allocation3 + $0x38] sm:$0xff] %vm799, %v782
            %808 = vst.msk [vmem:[#allocation3 + $0x40] sm:$0xff] %vm799, %v784
            %809 = vst.msk [vmem:[#allocation3 + $0x48] sm:$0xff] %vm799, %v786
            %810 = vst.msk [vmem:[#allocation3 + $0x50] sm:$0xff] %vm799, %v788
            %811 = vst.msk [vmem:[#allocation3 + $0x58] sm:$0xff] %vm799, %v790
            %812 = vst.msk [vmem:[#allocation3 + $0x60] sm:$0xff] %vm799, %v792
            %813 = vst.msk [vmem:[#allocation3 + $0x68] sm:$0xff] %vm799, %v794
            %814 = vst.msk [vmem:[#allocation3 + $0x70] sm:$0xff] %vm799, %v796
            %815 = vst.msk [vmem:[#allocation3 + $0x78] sm:$0xff] %vm799, %v798
          $region52: #{tpu_custom_call.1} parent=47 // pred_fallthru
            _
          %v816 = vld [vmem:[%s196] sm:$0xff]
          %v817 = vld [vmem:[%s196 + $0x8] sm:$0xff]
          %v818 = vld [vmem:[%s196 + $0x10] sm:$0xff]
          %v819 = vld [vmem:[%s196 + $0x18] sm:$0xff]
          %v820 = vld [vmem:[%s196 + $0x20] sm:$0xff]
          %v821 = vld [vmem:[%s196 + $0x28] sm:$0xff]
          %v822 = vld [vmem:[%s196 + $0x30] sm:$0xff]
          %v823 = vld [vmem:[%s196 + $0x38] sm:$0xff]
          %v824 = vld [vmem:[%s196 + $0x40] sm:$0xff]
          %v825 = vld [vmem:[%s196 + $0x48] sm:$0xff]
          %v826 = vld [vmem:[%s196 + $0x50] sm:$0xff]
          %v827 = vld [vmem:[%s196 + $0x58] sm:$0xff]
          %v828 = vld [vmem:[%s196 + $0x60] sm:$0xff]
          %v829 = vld [vmem:[%s196 + $0x68] sm:$0xff]
          %v830 = vld [vmem:[%s196 + $0x70] sm:$0xff]
          %v831 = vld [vmem:[%s196 + $0x78] sm:$0xff]
          %v832 = vld [vmem:[%s196 + $0x80] sm:$0xff]
          %v833 = vld [vmem:[%s196 + $0x88] sm:$0xff]
          %v834 = vld [vmem:[%s196 + $0x90] sm:$0xff]
          %v835 = vld [vmem:[%s196 + $0x98] sm:$0xff]
          %v836 = vld [vmem:[%s196 + $0xa0] sm:$0xff]
          %v837 = vld [vmem:[%s196 + $0xa8] sm:$0xff]
          %v838 = vld [vmem:[%s196 + $0xb0] sm:$0xff]
          %v839 = vld [vmem:[%s196 + $0xb8] sm:$0xff]
          %v840 = vld [vmem:[%s196 + $0xc0] sm:$0xff]
          %v841 = vld [vmem:[%s196 + $0xc8] sm:$0xff]
          %v842 = vld [vmem:[%s196 + $0xd0] sm:$0xff]
          %v843 = vld [vmem:[%s196 + $0xd8] sm:$0xff]
          %v844 = vld [vmem:[%s196 + $0xe0] sm:$0xff]
          %v845 = vld [vmem:[%s196 + $0xe8] sm:$0xff]
          %v846 = vld [vmem:[%s196 + $0xf0] sm:$0xff]
          %v847 = vld [vmem:[%s196 + $0xf8] sm:$0xff]
          %v848 = vld [vmem:[#allocation3] sm:$0xff]
          %v849 = vld [vmem:[#allocation3 + $0x8] sm:$0xff]
          %v850 = vld [vmem:[#allocation3 + $0x10] sm:$0xff]
          %v851 = vld [vmem:[#allocation3 + $0x18] sm:$0xff]
          %v852 = vld [vmem:[#allocation3 + $0x20] sm:$0xff]
          %v853 = vld [vmem:[#allocation3 + $0x28] sm:$0xff]
          %v854 = vld [vmem:[#allocation3 + $0x30] sm:$0xff]
          %v855 = vld [vmem:[#allocation3 + $0x38] sm:$0xff]
          %v856 = vld [vmem:[#allocation3 + $0x40] sm:$0xff]
          %v857 = vld [vmem:[#allocation3 + $0x48] sm:$0xff]
          %v858 = vld [vmem:[#allocation3 + $0x50] sm:$0xff]
          %v859 = vld [vmem:[#allocation3 + $0x58] sm:$0xff]
          %v860 = vld [vmem:[#allocation3 + $0x60] sm:$0xff]
          %v861 = vld [vmem:[#allocation3 + $0x68] sm:$0xff]
          %v862 = vld [vmem:[#allocation3 + $0x70] sm:$0xff]
          %v863 = vld [vmem:[#allocation3 + $0x78] sm:$0xff]
          %865 = vset.pattern.permute.xlu0 0
          %866 = vperm.xlu0 %865, %v848
          %v867 = vpop.permute.xlu0 %866
          %870 = vset.pattern.permute.xlu0 0
          %871 = vperm.xlu0 %870, %v849
          %v872 = vpop.permute.xlu0 %871
          %875 = vset.pattern.permute.xlu0 0
          %876 = vperm.xlu0 %875, %v850
          %v877 = vpop.permute.xlu0 %876
          %880 = vset.pattern.permute.xlu0 0
          %881 = vperm.xlu0 %880, %v851
          %v882 = vpop.permute.xlu0 %881
          %885 = vset.pattern.permute.xlu0 0
          %886 = vperm.xlu0 %885, %v852
          %v887 = vpop.permute.xlu0 %886
          %890 = vset.pattern.permute.xlu0 0
          %891 = vperm.xlu0 %890, %v853
          %v892 = vpop.permute.xlu0 %891
          %895 = vset.pattern.permute.xlu0 0
          %896 = vperm.xlu0 %895, %v854
          %v897 = vpop.permute.xlu0 %896
          %900 = vset.pattern.permute.xlu0 0
          %901 = vperm.xlu0 %900, %v855
          %v902 = vpop.permute.xlu0 %901
          %905 = vset.pattern.permute.xlu0 0
          %906 = vperm.xlu0 %905, %v856
          %v907 = vpop.permute.xlu0 %906
          %910 = vset.pattern.permute.xlu0 0
          %911 = vperm.xlu0 %910, %v857
          %v912 = vpop.permute.xlu0 %911
          %915 = vset.pattern.permute.xlu0 0
          %916 = vperm.xlu0 %915, %v858
          %v917 = vpop.permute.xlu0 %916
          %920 = vset.pattern.permute.xlu0 0
          %921 = vperm.xlu0 %920, %v859
          %v922 = vpop.permute.xlu0 %921
          %925 = vset.pattern.permute.xlu0 0
          %926 = vperm.xlu0 %925, %v860
          %v927 = vpop.permute.xlu0 %926
          %930 = vset.pattern.permute.xlu0 0
          %931 = vperm.xlu0 %930, %v861
          %v932 = vpop.permute.xlu0 %931
          %935 = vset.pattern.permute.xlu0 0
          %936 = vperm.xlu0 %935, %v862
          %v937 = vpop.permute.xlu0 %936
          %940 = vset.pattern.permute.xlu0 0
          %941 = vperm.xlu0 %940, %v863
          %v942 = vpop.permute.xlu0 %941
          %v944 = vmul.f32 %v816, %v867
          %v945 = vmul.f32 %v817, %v867
          %v946 = vmul.f32 %v818, %v872
          %v947 = vmul.f32 %v819, %v872
          %v948 = vmul.f32 %v820, %v877
          %v949 = vmul.f32 %v821, %v877
          %v950 = vmul.f32 %v822, %v882
          %v951 = vmul.f32 %v823, %v882
          %v952 = vmul.f32 %v824, %v887
          %v953 = vmul.f32 %v825, %v887
          %v954 = vmul.f32 %v826, %v892
          %v955 = vmul.f32 %v827, %v892
          %v956 = vmul.f32 %v828, %v897
          %v957 = vmul.f32 %v829, %v897
          %v958 = vmul.f32 %v830, %v902
          %v959 = vmul.f32 %v831, %v902
          %v960 = vmul.f32 %v832, %v907
          %v961 = vmul.f32 %v833, %v907
          %v962 = vmul.f32 %v834, %v912
          %v963 = vmul.f32 %v835, %v912
          %v964 = vmul.f32 %v836, %v917
          %v965 = vmul.f32 %v837, %v917
          %v966 = vmul.f32 %v838, %v922
          %v967 = vmul.f32 %v839, %v922
          %v968 = vmul.f32 %v840, %v927
          %v969 = vmul.f32 %v841, %v927
          %v970 = vmul.f32 %v842, %v932
          %v971 = vmul.f32 %v843, %v932
          %v972 = vmul.f32 %v844, %v937
          %v973 = vmul.f32 %v845, %v937
          %v974 = vmul.f32 %v846, %v942
          %v975 = vmul.f32 %v847, %v942
          %976 = vst [vmem:[%s218] sm:$0xff] %v944
          %977 = vst [vmem:[%s218 + $0x8] sm:$0xff] %v945
          %978 = vst [vmem:[%s218 + $0x10] sm:$0xff] %v946
          %979 = vst [vmem:[%s218 + $0x18] sm:$0xff] %v947
          %980 = vst [vmem:[%s218 + $0x20] sm:$0xff] %v948
          %981 = vst [vmem:[%s218 + $0x28] sm:$0xff] %v949
          %982 = vst [vmem:[%s218 + $0x30] sm:$0xff] %v950
          %983 = vst [vmem:[%s218 + $0x38] sm:$0xff] %v951
          %984 = vst [vmem:[%s218 + $0x40] sm:$0xff] %v952
          %985 = vst [vmem:[%s218 + $0x48] sm:$0xff] %v953
          %986 = vst [vmem:[%s218 + $0x50] sm:$0xff] %v954
          %987 = vst [vmem:[%s218 + $0x58] sm:$0xff] %v955
          %988 = vst [vmem:[%s218 + $0x60] sm:$0xff] %v956
          %989 = vst [vmem:[%s218 + $0x68] sm:$0xff] %v957
          %990 = vst [vmem:[%s218 + $0x70] sm:$0xff] %v958
          %991 = vst [vmem:[%s218 + $0x78] sm:$0xff] %v959
          %992 = vst [vmem:[%s218 + $0x80] sm:$0xff] %v960
          %993 = vst [vmem:[%s218 + $0x88] sm:$0xff] %v961
          %994 = vst [vmem:[%s218 + $0x90] sm:$0xff] %v962
          %995 = vst [vmem:[%s218 + $0x98] sm:$0xff] %v963
          %996 = vst [vmem:[%s218 + $0xa0] sm:$0xff] %v964
          %997 = vst [vmem:[%s218 + $0xa8] sm:$0xff] %v965
          %998 = vst [vmem:[%s218 + $0xb0] sm:$0xff] %v966
          %999 = vst [vmem:[%s218 + $0xb8] sm:$0xff] %v967
          %1000 = vst [vmem:[%s218 + $0xc0] sm:$0xff] %v968
          %1001 = vst [vmem:[%s218 + $0xc8] sm:$0xff] %v969
          %1002 = vst [vmem:[%s218 + $0xd0] sm:$0xff] %v970
          %1003 = vst [vmem:[%s218 + $0xd8] sm:$0xff] %v971
          %1004 = vst [vmem:[%s218 + $0xe0] sm:$0xff] %v972
          %1005 = vst [vmem:[%s218 + $0xe8] sm:$0xff] %v973
          %1006 = vst [vmem:[%s218 + $0xf0] sm:$0xff] %v974
          %1007 = vst [vmem:[%s218 + $0xf8] sm:$0xff] %v975
        $region48: #{tpu_custom_call.1} parent=31 // pred_fallthru
          _
        %s1008 = sand.u32 %s122, 1
        %s1009 = scalar_lea.sflag [#allocation6], %s1008
        %s1010 = sand.u32 %s122, 1
        %s1011 = smul.addr %s1010, 256
        %s1012 = scalar_lea.vmem [#allocation7], %s1011
        // Predicated region
        $region53: #{tpu_custom_call.1} parent=31 // pred_check
          %p1013 = pneg %p132
        $region54: #{tpu_custom_call.1} parent=31 // pred_check_branch
          %1015 = sbr.rel (%p1013) target = $region56
        $region55: #{tpu_custom_call.1} parent=31 // pred_region
          %s1016 = ssub.s32 %s25, 1
          %p1017 = scmp.gt.s32.totalorder %s1016, 0
          %s1018 = scalar_select %p1017, %s1016, 0
          %s1019 = smul.u32 2, %s1018
          %s1021 = ssub.s32 4096, 4096
          %1022 = vsyncadd %s1009, %s1021
          %s1023 = smul.addr %s24, 32
          %s1024 = sadd.s32 %s1019, %s1023
          %s1025 = smul.addr %s1024, 128
          %s1026 = scalar_lea.hbm %s3, %s1025
          %s1027 = sshll.u32 %s1012, 4
          %s1028 = int_to_ptr.vmem [resolvable:$true] %s1027
          %1033 = dma.vmem_to_hbm [thread:$0]  %s1028, 4096, %s1026, %s1009, 256, 256, 16
        $region56: #{tpu_custom_call.1} parent=31 // pred_fallthru
          _
      $region32: #{tpu_custom_call.1} parent=5 // pred_fallthru
        _
      %p1034 = scmp.le.s32.totalorder 2, %s15
      // Predicated region
      $region57: #{tpu_custom_call.1} parent=5 // pred_check
        %p1035 = pneg %p1034
      $region58: #{tpu_custom_call.1} parent=5 // pred_check_branch
        %1037 = sbr.rel (%p1035) target = $region60
      $region59: #{tpu_custom_call.1} parent=5 // pred_region
        %s1038 = ssub.s32 %s15, 2
        // Predicated region
        $region61: #{tpu_custom_call.1} parent=59 // pred_check
          %p1039 = pneg %p138
        $region62: #{tpu_custom_call.1} parent=59 // pred_check_branch
          %1041 = sbr.rel (%p1039) target = $region64
        $region63: #{tpu_custom_call.1} parent=59 // pred_region
          %s1042 = sand.u32 %s123, 1
          %s1043 = scalar_lea.sflag [#allocation6], %s1042
          %s1044 = sand.u32 %s123, 1
          %s1045 = smul.addr %s1044, 256
          %s1046 = scalar_lea.vmem [#allocation7], %s1045
          %1047 = dma.done %s1043, 4096
        $region64: #{tpu_custom_call.1} parent=59 // pred_fallthru
          _
      $region60: #{tpu_custom_call.1} parent=5 // pred_fallthru
        _
    $region6: #{tpu_custom_call.1} parent=1 // loop_footer
      %s19 = sadd.s32 1, %s15
    $region7: #{tpu_custom_call.1} parent=1 // loop_footer_branch
      %14 = sbr.rel target = $region3
    $region8: #{tpu_custom_call.1} parent=1 // loop_exit
      _
    %1048 = vsyncpa [#allocation5], 1
    %s1049 = scalar_lea.sflag [#allocation5], 1
    %1050 = vsyncpa %s1049, 1
    %1051 = vsyncpa [#allocation6], 1
    %s1052 = scalar_lea.sflag [#allocation6], 1
    %1053 = vsyncpa %s1052, 1

</llo_original>
